<compile_context>
chip_gen: v5e
topology: v5e:2x2
jax: 0.10.0
libtpu: 0.0.40
codegen_flags: <defaults>
</compile_context>

<pallas_src>
import functools

import jax
import jax.numpy as jnp
from jax.experimental import pallas as pl
from jax.experimental.pallas import tpu as pltpu

LANE = 128
SUBLANE = 8
TB_CAP = 4096          # max batch-tile rows (fits scoped VMEM on all gens)
SPLIT_THRESHOLD = 512  # batches above this get >= 2 grid steps (dual-TC v7x)


def _round_up(x, m):
    return (x + m - 1) // m * m


def _cdiv(a, b):
    return (a + b - 1) // b


def _qnetwork_kernel(x_ref,
                     w1_ref, b1_ref,
                     w2_ref, b2_ref,
                     w3_ref, b3_ref,
                     w4_ref, b4_ref,
                     out_ref, *, compute_dtype):
    """Fused forward: relu(relu(relu(x@W1+b1)@W2+b2)@W3+b3)@W4+b4.

    MXU operands are `compute_dtype`; accumulation is f32 via
    preferred_element_type; bias add + ReLU run in f32 on the VPU (v5e-safe);
    inter-layer activations are stored in `compute_dtype`.
    """
    dt = compute_dtype
    x = x_ref[...].astype(dt)

    h = jnp.dot(x, w1_ref[...], preferred_element_type=jnp.float32)
    h = jnp.maximum(h + b1_ref[...], 0.0).astype(dt)

    h = jnp.dot(h, w2_ref[...], preferred_element_type=jnp.float32)
    h = jnp.maximum(h + b2_ref[...], 0.0).astype(dt)

    h = jnp.dot(h, w3_ref[...], preferred_element_type=jnp.float32)
    h = jnp.maximum(h + b3_ref[...], 0.0).astype(dt)

    out = jnp.dot(h, w4_ref[...], preferred_element_type=jnp.float32) + b4_ref[...]
    out_ref[...] = out.astype(out_ref.dtype)


@functools.partial(jax.jit, static_argnames=("compute_dtype", "tb"))
def qnetwork_forward(state, params, compute_dtype=jnp.bfloat16, tb=None):
    """Batched forward pass through the fused Pallas QNetwork kernel.

    `params` = ((w1,b1),(w2,b2),(w3,b3),(w4,b4)); weights are (in,out), biases
    (1,out).  Pass params through `prepare_qnetwork_params` to avoid per-call
    casting ops.
    """
    (w1, b1), (w2, b2), (w3, b3), (w4, b4) = params
    batch, state_size = state.shape
    fc1, fc2, fc3 = w1.shape[1], w2.shape[1], w3.shape[1]
    action_size = w4.shape[1]

    cdt = jnp.dtype(compute_dtype)
    cbytes = cdt.itemsize

    # ---- batch tiling -------------------------------------------------------
    rb = _round_up(batch, SUBLANE)
    if tb is None:
        # At least 2 steps for big batches (dual-TC on v7x), biggest tile that
        # fits the VMEM cap otherwise; tiles are sublane-aligned.
        steps = max(_cdiv(rb, TB_CAP), 2 if rb > SPLIT_THRESHOLD else 1)
        tb = _round_up(_cdiv(rb, steps), SUBLANE)
    tb = min(_round_up(tb, SUBLANE), rb)
    padded_batch = _round_up(batch, tb)
    if padded_batch != batch:
        state = jnp.pad(state, ((0, padded_batch - batch), (0, 0)))

    # ---- MXU operand dtype (f32 accumulate regardless); no-op if pre-cast ---
    ws = tuple(w if w.dtype == cdt else w.astype(cdt) for w in (w1, w2, w3, w4))
    bs = (b1, b2, b3, b4)  # biases stay f32

    grid = (padded_batch // tb,)

    def act_spec(feat):            # tiled over batch, pipelined
        return pl.BlockSpec((tb, feat), lambda i: (i, 0))

    def res_spec(arr):             # VMEM-resident across all grid steps
        return pl.BlockSpec(arr.shape, lambda i: (0, 0))

    # ---- scoped-VMEM budget (v5e default is only 16 MiB) --------------------
    io_bytes = 4 * tb * LANE * 4                                   # x + out, x2 buffers
    inter_bytes = tb * sum(_round_up(n, LANE) for n in (fc1, fc2, fc3)) * (4 + cbytes)
    resident_bytes = 2 * sum(w.size * w.dtype.itemsize for w in ws) \
        + 2 * sum(b.size * b.dtype.itemsize for b in bs)
    vmem_limit = int(min(max((io_bytes + inter_bytes + resident_bytes) * 5 // 4,
                             32 << 20), 56 << 20))

    flops = 2 * padded_batch * (state_size * fc1 + fc1 * fc2
                                + fc2 * fc3 + fc3 * action_size)
    bytes_accessed = (state.size * state.dtype.itemsize
                      + sum(w.size * w.dtype.itemsize for w in ws)
                      + sum(b.size * b.dtype.itemsize for b in bs)
                      + padded_batch * action_size * 4)

    out = pl.pallas_call(
        functools.partial(_qnetwork_kernel, compute_dtype=cdt),
        out_shape=jax.ShapeDtypeStruct((padded_batch, action_size), jnp.float32),
        grid=grid,
        in_specs=[
            act_spec(state_size),
            res_spec(ws[0]), res_spec(bs[0]),
            res_spec(ws[1]), res_spec(bs[1]),
            res_spec(ws[2]), res_spec(bs[2]),
            res_spec(ws[3]), res_spec(bs[3]),
        ],
        out_specs=act_spec(action_size),   # un-padded, full-width last dim
        compiler_params=pltpu.CompilerParams(
            dimension_semantics=("parallel",),
            vmem_limit_bytes=vmem_limit),
        cost_estimate=pl.CostEstimate(
            flops=flops, transcendentals=0, bytes_accessed=bytes_accessed),
    )(state,
      ws[0], bs[0], ws[1], bs[1], ws[2], bs[2], ws[3], bs[3])

    return out if padded_batch == batch else out[:batch]


def prepare_qnetwork_params(params, compute_dtype=jnp.bfloat16):
    """Pre-cast weights to the MXU operand dtype once (biases stay f32)."""
    cdt = jnp.dtype(compute_dtype)
    return tuple((w.astype(cdt), b) for (w, b) in params)


def init_linear(key, in_features, out_features):
    """torch.nn.Linear-style init: U(-1/sqrt(in), 1/sqrt(in)).
    Weight stored (in_features, out_features) for x @ W; bias stored (1, N)."""
    kw, kb = jax.random.split(key)
    bound = 1.0 / jnp.sqrt(jnp.float32(in_features))
    w = jax.random.uniform(kw, (in_features, out_features), jnp.float32,
                           minval=-bound, maxval=bound)
    b = jax.random.uniform(kb, (1, out_features), jnp.float32,
                           minval=-bound, maxval=bound)
    return w, b


def init_qnetwork(key, state_size, action_size,
                  fc1_units=256, fc2_units=128, fc3_units=32):
    k1, k2, k3, k4 = jax.random.split(key, 4)
    return (
        init_linear(k1, state_size, fc1_units),
        init_linear(k2, fc1_units, fc2_units),
        init_linear(k3, fc2_units, fc3_units),
        init_linear(k4, fc3_units, action_size),
    )


def qnetwork_reference(state, params):
    """Pure-JAX reference for correctness checking."""
    (w1, b1), (w2, b2), (w3, b3), (w4, b4) = params
    h = jnp.maximum(state @ w1 + b1, 0.0)
    h = jnp.maximum(h @ w2 + b2, 0.0)
    h = jnp.maximum(h @ w3 + b3, 0.0)
    return h @ w4 + b4


if __name__ == "__main__":
    key = jax.random.PRNGKey(0)
    k_params, k_s1, k_s2, k_s3 = jax.random.split(key, 4)

    # Small shapes consistent with the module: state_size=8, action_size=4.
    state_size, action_size = 8, 4
    params = init_qnetwork(k_params, state_size, action_size)
    params_bf16 = prepare_qnetwork_params(params, jnp.bfloat16)

    # 1) batch=8, explicit f32 operands (single grid step), tight tolerance.
    state = jax.random.normal(k_s1, (8, state_size), jnp.float32)
    ref = qnetwork_reference(state, params)
    out = jax.block_until_ready(
        qnetwork_forward(state, params, compute_dtype=jnp.float32))
    assert out.shape == (8, action_size)
    assert jnp.allclose(out, ref, atol=1e-5, rtol=1e-5)

    # 2) ragged batch=20 with a small tile (tb=8): 3 grid steps + row padding,
    #    f32 operands, tight tolerance.
    state2 = jax.random.normal(k_s2, (20, state_size), jnp.float32)
    out2 = jax.block_until_ready(
        qnetwork_forward(state2, params, compute_dtype=jnp.float32, tb=8))
    ref2 = qnetwork_reference(state2, params)
    assert out2.shape == (20, action_size)
    assert jnp.allclose(out2, ref2, atol=1e-5, rtol=1e-5)

    # 3) default path: bf16 MXU operands with pre-cast weights, loose tolerance.
    out3 = jax.block_until_ready(qnetwork_forward(state, params_bf16))
    assert out3.shape == (8, action_size)
    assert jnp.allclose(out3, ref, atol=1e-1, rtol=1e-1)

    # 4) batch=600 exercises the auto tile picker (splits into 2 grid steps),
    #    default bf16 path, loose tolerance.
    state3 = jax.random.normal(k_s3, (600, state_size), jnp.float32)
    out4 = jax.block_until_ready(qnetwork_forward(state3, params_bf16))
    ref4 = qnetwork_reference(state3, params)
    assert out4.shape == (600, action_size)
    assert jnp.allclose(out4, ref4, atol=1e-1, rtol=1e-1)

    print("KERNEL_OK")
</pallas_src>

<mosaic_0001>
module attributes {stable_mosaic.version = 11 : i64} {
  func.func @_qnetwork_kernel(%arg0: i32, %arg1: memref<8x8xf32, #tpu.memory_space<vmem>>, %arg2: memref<8x256xf32, #tpu.memory_space<vmem>>, %arg3: memref<1x256xf32, #tpu.memory_space<vmem>>, %arg4: memref<256x128xf32, #tpu.memory_space<vmem>>, %arg5: memref<1x128xf32, #tpu.memory_space<vmem>>, %arg6: memref<128x32xf32, #tpu.memory_space<vmem>>, %arg7: memref<1x32xf32, #tpu.memory_space<vmem>>, %arg8: memref<32x4xf32, #tpu.memory_space<vmem>>, %arg9: memref<1x4xf32, #tpu.memory_space<vmem>>, %arg10: memref<8x4xf32, #tpu.memory_space<vmem>>) attributes {dimension_semantics = [#tpu.dimension_semantics<parallel>], iteration_bounds = array<i64: 1>, scalar_prefetch = 0 : i64, scratch_operands = 0 : i64, tpu.core_type = #tpu.core_type<tc>, window_params = [{transform_indices = @transform_0, window_bounds = array<i64: 8, 8>}, {pipeline_mode = #tpu.pipeline_mode<synchronous>, transform_indices = @transform_1, window_bounds = array<i64: 8, 256>}, {pipeline_mode = #tpu.pipeline_mode<synchronous>, transform_indices = @transform_2, window_bounds = array<i64: 1, 256>}, {pipeline_mode = #tpu.pipeline_mode<synchronous>, transform_indices = @transform_3, window_bounds = array<i64: 256, 128>}, {pipeline_mode = #tpu.pipeline_mode<synchronous>, transform_indices = @transform_4, window_bounds = array<i64: 1, 128>}, {pipeline_mode = #tpu.pipeline_mode<synchronous>, transform_indices = @transform_5, window_bounds = array<i64: 128, 32>}, {pipeline_mode = #tpu.pipeline_mode<synchronous>, transform_indices = @transform_6, window_bounds = array<i64: 1, 32>}, {pipeline_mode = #tpu.pipeline_mode<synchronous>, transform_indices = @transform_7, window_bounds = array<i64: 32, 4>}, {pipeline_mode = #tpu.pipeline_mode<synchronous>, transform_indices = @transform_8, window_bounds = array<i64: 1, 4>}, {transform_indices = @transform_9, window_bounds = array<i64: 8, 4>}]} {
    %c0 = arith.constant 0 : index
    %c0_0 = arith.constant 0 : index
    %0 = vector.load %arg1[%c0, %c0_0] : memref<8x8xf32, #tpu.memory_space<vmem>>, vector<8x8xf32>
    %c0_1 = arith.constant 0 : index
    %c0_2 = arith.constant 0 : index
    %1 = vector.load %arg2[%c0_1, %c0_2] : memref<8x256xf32, #tpu.memory_space<vmem>>, vector<8x256xf32>
    %cst = arith.constant dense<0.000000e+00> : vector<8x256xf32>
    %2 = tpu.matmul %0, %1, %cst {dimension_numbers = #tpu.dot_dimension_numbers<[1], [0], [0], [1], [0, 0, 1, 1], [], []>} : vector<8x8xf32>, vector<8x256xf32>, vector<8x256xf32> -> vector<8x256xf32>
    %c0_3 = arith.constant 0 : index
    %c0_4 = arith.constant 0 : index
    %3 = vector.load %arg3[%c0_3, %c0_4] : memref<1x256xf32, #tpu.memory_space<vmem>>, vector<1x256xf32>
    %4 = vector.broadcast %3 : vector<1x256xf32> to vector<8x256xf32>
    %5 = arith.addf %2, %4 : vector<8x256xf32>
    %cst_5 = arith.constant 0.000000e+00 : f32
    %6 = vector.broadcast %cst_5 : f32 to vector<8x256xf32>
    %7 = arith.maximumf %5, %6 : vector<8x256xf32>
    %c0_6 = arith.constant 0 : index
    %c0_7 = arith.constant 0 : index
    %8 = vector.load %arg4[%c0_6, %c0_7] : memref<256x128xf32, #tpu.memory_space<vmem>>, vector<256x128xf32>
    %cst_8 = arith.constant dense<0.000000e+00> : vector<8x128xf32>
    %9 = tpu.matmul %7, %8, %cst_8 {dimension_numbers = #tpu.dot_dimension_numbers<[1], [0], [0], [1], [0, 0, 1, 1], [], []>} : vector<8x256xf32>, vector<256x128xf32>, vector<8x128xf32> -> vector<8x128xf32>
    %c0_9 = arith.constant 0 : index
    %c0_10 = arith.constant 0 : index
    %10 = vector.load %arg5[%c0_9, %c0_10] : memref<1x128xf32, #tpu.memory_space<vmem>>, vector<1x128xf32>
    %11 = vector.broadcast %10 : vector<1x128xf32> to vector<8x128xf32>
    %12 = arith.addf %9, %11 : vector<8x128xf32>
    %cst_11 = arith.constant 0.000000e+00 : f32
    %13 = vector.broadcast %cst_11 : f32 to vector<8x128xf32>
    %14 = arith.maximumf %12, %13 : vector<8x128xf32>
    %c0_12 = arith.constant 0 : index
    %c0_13 = arith.constant 0 : index
    %15 = vector.load %arg6[%c0_12, %c0_13] : memref<128x32xf32, #tpu.memory_space<vmem>>, vector<128x32xf32>
    %cst_14 = arith.constant dense<0.000000e+00> : vector<8x32xf32>
    %16 = tpu.matmul %14, %15, %cst_14 {dimension_numbers = #tpu.dot_dimension_numbers<[1], [0], [0], [1], [0, 0, 1, 1], [], []>} : vector<8x128xf32>, vector<128x32xf32>, vector<8x32xf32> -> vector<8x32xf32>
    %c0_15 = arith.constant 0 : index
    %c0_16 = arith.constant 0 : index
    %17 = vector.load %arg7[%c0_15, %c0_16] : memref<1x32xf32, #tpu.memory_space<vmem>>, vector<1x32xf32>
    %18 = vector.broadcast %17 : vector<1x32xf32> to vector<8x32xf32>
    %19 = arith.addf %16, %18 : vector<8x32xf32>
    %cst_17 = arith.constant 0.000000e+00 : f32
    %20 = vector.broadcast %cst_17 : f32 to vector<8x32xf32>
    %21 = arith.maximumf %19, %20 : vector<8x32xf32>
    %c0_18 = arith.constant 0 : index
    %c0_19 = arith.constant 0 : index
    %22 = vector.load %arg8[%c0_18, %c0_19] : memref<32x4xf32, #tpu.memory_space<vmem>>, vector<32x4xf32>
    %cst_20 = arith.constant dense<0.000000e+00> : vector<8x4xf32>
    %23 = tpu.matmul %21, %22, %cst_20 {dimension_numbers = #tpu.dot_dimension_numbers<[1], [0], [0], [1], [0, 0, 1, 1], [], []>} : vector<8x32xf32>, vector<32x4xf32>, vector<8x4xf32> -> vector<8x4xf32>
    %c0_21 = arith.constant 0 : index
    %c0_22 = arith.constant 0 : index
    %24 = vector.load %arg9[%c0_21, %c0_22] : memref<1x4xf32, #tpu.memory_space<vmem>>, vector<1x4xf32>
    %25 = vector.broadcast %24 : vector<1x4xf32> to vector<8x4xf32>
    %26 = arith.addf %23, %25 : vector<8x4xf32>
    %c0_23 = arith.constant 0 : index
    %c0_24 = arith.constant 0 : index
    %27 = vector.load %arg10[%c0_23, %c0_24] : memref<8x4xf32, #tpu.memory_space<vmem>>, vector<8x4xf32>
    tpu.vector_store %arg10[%c0_23, %c0_24], %26 {strides = array<i32>} : memref<8x4xf32, #tpu.memory_space<vmem>>, vector<8x4xf32>,
    return
  }
  func.func @transform_0(%arg0: i32) -> (i32, i32) {
    %c0_i32 = arith.constant 0 : i32
    %c0_i32_0 = arith.constant 0 : i32
    return %arg0, %c0_i32 : i32, i32
  }
  func.func @transform_1(%arg0: i32) -> (i32, i32) {
    %c0_i32 = arith.constant 0 : i32
    %c0_i32_0 = arith.constant 0 : i32
    %c0_i32_1 = arith.constant 0 : i32
    return %c0_i32, %c0_i32_0 : i32, i32
  }
  func.func @transform_2(%arg0: i32) -> (i32, i32) {
    %c0_i32 = arith.constant 0 : i32
    %c0_i32_0 = arith.constant 0 : i32
    %c0_i32_1 = arith.constant 0 : i32
    return %c0_i32, %c0_i32_0 : i32, i32
  }
  func.func @transform_3(%arg0: i32) -> (i32, i32) {
    %c0_i32 = arith.constant 0 : i32
    %c0_i32_0 = arith.constant 0 : i32
    %c0_i32_1 = arith.constant 0 : i32
    return %c0_i32, %c0_i32_0 : i32, i32
  }
  func.func @transform_4(%arg0: i32) -> (i32, i32) {
    %c0_i32 = arith.constant 0 : i32
    %c0_i32_0 = arith.constant 0 : i32
    %c0_i32_1 = arith.constant 0 : i32
    return %c0_i32, %c0_i32_0 : i32, i32
  }
  func.func @transform_5(%arg0: i32) -> (i32, i32) {
    %c0_i32 = arith.constant 0 : i32
    %c0_i32_0 = arith.constant 0 : i32
    %c0_i32_1 = arith.constant 0 : i32
    return %c0_i32, %c0_i32_0 : i32, i32
  }
  func.func @transform_6(%arg0: i32) -> (i32, i32) {
    %c0_i32 = arith.constant 0 : i32
    %c0_i32_0 = arith.constant 0 : i32
    %c0_i32_1 = arith.constant 0 : i32
    return %c0_i32, %c0_i32_0 : i32, i32
  }
  func.func @transform_7(%arg0: i32) -> (i32, i32) {
    %c0_i32 = arith.constant 0 : i32
    %c0_i32_0 = arith.constant 0 : i32
    %c0_i32_1 = arith.constant 0 : i32
    return %c0_i32, %c0_i32_0 : i32, i32
  }
  func.func @transform_8(%arg0: i32) -> (i32, i32) {
    %c0_i32 = arith.constant 0 : i32
    %c0_i32_0 = arith.constant 0 : i32
    %c0_i32_1 = arith.constant 0 : i32
    return %c0_i32, %c0_i32_0 : i32, i32
  }
  func.func @transform_9(%arg0: i32) -> (i32, i32) {
    %c0_i32 = arith.constant 0 : i32
    %c0_i32_0 = arith.constant 0 : i32
    return %arg0, %c0_i32 : i32, i32
  }
}

</mosaic_0001>

<llo_original>
// kernel: qnetwork_forward.1
$region0: #{qnetwork_forward.1}
  #allocation0 [shape = 'u32[]', space=smem, size = 0x4, offset = 0x4, fixed_abs, tag = 'smem constant byte address 0x4 - core index']
  #allocation1 [shape = 'u32[72,128]{1,0:T(1,128)}', space=vmem, size = 0x9000, scoped, tag = 'internal scratch']
  %s0 = inlined_call_operand.vmem [shape: f32[8,8], index: 0, kind: input, shape index: {}]
  %s1 = inlined_call_operand.vmem [shape: f32[8,256], index: 1, kind: input, shape index: {}]
  %s2 = inlined_call_operand.vmem [shape: f32[1,256], index: 2, kind: input, shape index: {}]
  %s3 = inlined_call_operand.hbm [shape: f32[256,128], index: 3, kind: input, shape index: {}]
  %s4 = inlined_call_operand.vmem [shape: f32[1,128], index: 4, kind: input, shape index: {}]
  %s5 = inlined_call_operand.vmem [shape: f32[128,32], index: 5, kind: input, shape index: {}]
  %s6 = inlined_call_operand.vmem [shape: f32[1,32], index: 6, kind: input, shape index: {}]
  %s7 = inlined_call_operand.vmem [shape: f32[32,4], index: 7, kind: input, shape index: {}]
  %s8 = inlined_call_operand.vmem [shape: f32[1,4], index: 8, kind: input, shape index: {}]
  %s9 = inlined_call_operand.vmem [shape: f32[8,4], index: 9, kind: output, shape index: {}]
  %s10 = sld [smem:[#allocation0]]
  $region50: #{qnetwork_forward.1} parent=0
    _
  %s12 = ssub.s32 1, %s10
  %s13 = scalar_select 0, %s12, %s10
  $region1: #{qnetwork_forward.1} parent=0
    #allocation2 [shape = 'u8[131072]{0}', space=vmem, size = 0x20000, scoped, tag = 'input window, operand 3, single buffered']
    #allocation3 [shape = 's32[1]{0}', space=sflag, size = 0x4, scoped, tag = 'scoped memory for qnetwork_forward.1']
    %14 = vsyncpa [#allocation3], 0
    // Predicated region
    $region2: #{qnetwork_forward.1} parent=1 // pred_check
      _
    $region3: #{qnetwork_forward.1} parent=1 // pred_check_branch
      %16 = sbr.rel (0) target = $region5
    $region4: #{qnetwork_forward.1} parent=1 // pred_region
      _
    $region5: #{qnetwork_forward.1} parent=1 // pred_fallthru
      _
    // Predicated region
    $region6: #{qnetwork_forward.1} parent=1 // pred_check
      _
    $region7: #{qnetwork_forward.1} parent=1 // pred_check_branch
      %18 = sbr.rel (0) target = $region9
    $region8: #{qnetwork_forward.1} parent=1 // pred_region
      _
    $region9: #{qnetwork_forward.1} parent=1 // pred_fallthru
      _
    // Predicated region
    $region10: #{qnetwork_forward.1} parent=1 // pred_check
      _
    $region11: #{qnetwork_forward.1} parent=1 // pred_check_branch
      %20 = sbr.rel (0) target = $region13
    $region12: #{qnetwork_forward.1} parent=1 // pred_region
      _
    $region13: #{qnetwork_forward.1} parent=1 // pred_fallthru
      _
    // Predicated region
    $region14: #{qnetwork_forward.1} parent=1 // pred_check
      _
    $region15: #{qnetwork_forward.1} parent=1 // pred_check_branch
      %22 = sbr.rel (0) target = $region17
    $region16: #{qnetwork_forward.1} parent=1 // pred_region
      %24 = vsyncadd [#allocation3], 0
      %s25 = sshll.u32 %s3, 4
      %s26 = int_to_ptr.hbm [resolvable:$true] %s25
      %s27 = sshll.u32 [#allocation2], 4
      %s28 = int_to_ptr.vmem [resolvable:$true] %s27
      %33 = dma.hbm_to_vmem [thread:$0]  %s26, 4096, %s28, [#allocation3], 128, 128, 8
    $region17: #{qnetwork_forward.1} parent=1 // pred_fallthru
      _
    // Predicated region
    $region18: #{qnetwork_forward.1} parent=1 // pred_check
      _
    $region19: #{qnetwork_forward.1} parent=1 // pred_check_branch
      %35 = sbr.rel (0) target = $region21
    $region20: #{qnetwork_forward.1} parent=1 // pred_region
      _
    $region21: #{qnetwork_forward.1} parent=1 // pred_fallthru
      _
    // Predicated region
    $region22: #{qnetwork_forward.1} parent=1 // pred_check
      _
    $region23: #{qnetwork_forward.1} parent=1 // pred_check_branch
      %37 = sbr.rel (0) target = $region25
    $region24: #{qnetwork_forward.1} parent=1 // pred_region
      _
    $region25: #{qnetwork_forward.1} parent=1 // pred_fallthru
      _
    // Predicated region
    $region26: #{qnetwork_forward.1} parent=1 // pred_check
      _
    $region27: #{qnetwork_forward.1} parent=1 // pred_check_branch
      %39 = sbr.rel (0) target = $region29
    $region28: #{qnetwork_forward.1} parent=1 // pred_region
      _
    $region29: #{qnetwork_forward.1} parent=1 // pred_fallthru
      _
    // Predicated region
    $region30: #{qnetwork_forward.1} parent=1 // pred_check
      _
    $region31: #{qnetwork_forward.1} parent=1 // pred_check_branch
      %41 = sbr.rel (0) target = $region33
    $region32: #{qnetwork_forward.1} parent=1 // pred_region
      _
    $region33: #{qnetwork_forward.1} parent=1 // pred_fallthru
      _
    // Predicated region
    $region34: #{qnetwork_forward.1} parent=1 // pred_check
      _
    $region35: #{qnetwork_forward.1} parent=1 // pred_check_branch
      %43 = sbr.rel (0) target = $region37
    $region36: #{qnetwork_forward.1} parent=1 // pred_region
      _
    $region37: #{qnetwork_forward.1} parent=1 // pred_fallthru
      _
    // Predicated region
    $region38: #{qnetwork_forward.1} parent=1 // pred_check
      _
    $region39: #{qnetwork_forward.1} parent=1 // pred_check_branch
      %45 = sbr.rel (0) target = $region41
    $region40: #{qnetwork_forward.1} parent=1 // pred_region
      %47 = dma.done [#allocation3], 4096
    $region41: #{qnetwork_forward.1} parent=1 // pred_fallthru
      _
    %v48 = vld [vmem:[%s0] sm:$0xff]
    %v49 = vld [vmem:[%s1] sm:$0xff]
    %v50 = vld [vmem:[%s1 + $0x8] sm:$0xff]
    %v51 = vld [vmem:[%s2] sm:$0x3]
    %v53 = vperm.slane %v51, 0
    %v54 = vperm.slane %v51, 1
    %vm57 = vcmask 64512
    %v59 = vsel %vm57, %v48, 0
    %61 = vmatpush.msra.mxu0 0.0
    %62 = vmatpush.msra.mxu0 0.0
    %63 = vmatpush.msra.mxu0 0.0
    %64 = vmatpush.msra.mxu0 0.0
    %65 = vmatpush.msra.mxu0 0.0
    %66 = vmatpush.msra.mxu0 0.0
    %67 = vmatpush.msra.mxu0 0.0
    %68 = vmatpush.msra.mxu0 0.0
    %69 = vmatpush.msra.mxu0 0.0
    %70 = vmatpush.msra.mxu0 0.0
    %71 = vmatpush.msra.mxu0 0.0
    %72 = vmatpush.msra.mxu0 0.0
    %73 = vmatpush.msra.mxu0 0.0
    %74 = vmatpush.msra.mxu0 0.0
    %75 = vmatpush.msra.mxu0 0.0
    %76 = vmatpush.msra.mxu0 %v49
    %77 = vmatmul.f32.gmra.mxu0 %v59
    %v78 = vpop.f32.mrf.mxu0
    %v79 = vadd.f32 %v53, %v78
    %80 = vdwg.mxu0
    %81 = vmatpush.msra.mxu0 0.0
    %82 = vmatpush.msra.mxu0 0.0
    %83 = vmatpush.msra.mxu0 0.0
    %84 = vmatpush.msra.mxu0 0.0
    %85 = vmatpush.msra.mxu0 0.0
    %86 = vmatpush.msra.mxu0 0.0
    %87 = vmatpush.msra.mxu0 0.0
    %88 = vmatpush.msra.mxu0 0.0
    %89 = vmatpush.msra.mxu0 0.0
    %90 = vmatpush.msra.mxu0 0.0
    %91 = vmatpush.msra.mxu0 0.0
    %92 = vmatpush.msra.mxu0 0.0
    %93 = vmatpush.msra.mxu0 0.0
    %94 = vmatpush.msra.mxu0 0.0
    %95 = vmatpush.msra.mxu0 0.0
    %96 = vmatpush.msra.mxu0 %v50
    %97 = vmatmul.f32.gmra.mxu0 %v59
    %v98 = vpop.f32.mrf.mxu0
    %v99 = vadd.f32 %v54, %v98
    %100 = vdwg.mxu0
    %v101 = vmax.f32 %v79, 0.0
    %v102 = vmax.f32 %v99, 0.0
    %v103 = vld [vmem:[#allocation2] sm:$0xff]
    %v104 = vld [vmem:[#allocation2 + $0x8] sm:$0xff]
    %v105 = vld [vmem:[#allocation2 + $0x10] sm:$0xff]
    %v106 = vld [vmem:[#allocation2 + $0x18] sm:$0xff]
    %v107 = vld [vmem:[#allocation2 + $0x20] sm:$0xff]
    %v108 = vld [vmem:[#allocation2 + $0x28] sm:$0xff]
    %v109 = vld [vmem:[#allocation2 + $0x30] sm:$0xff]
    %v110 = vld [vmem:[#allocation2 + $0x38] sm:$0xff]
    %v111 = vld [vmem:[#allocation2 + $0x40] sm:$0xff]
    %v112 = vld [vmem:[#allocation2 + $0x48] sm:$0xff]
    %v113 = vld [vmem:[#allocation2 + $0x50] sm:$0xff]
    %v114 = vld [vmem:[#allocation2 + $0x58] sm:$0xff]
    %v115 = vld [vmem:[#allocation2 + $0x60] sm:$0xff]
    %v116 = vld [vmem:[#allocation2 + $0x68] sm:$0xff]
    %v117 = vld [vmem:[#allocation2 + $0x70] sm:$0xff]
    %v118 = vld [vmem:[#allocation2 + $0x78] sm:$0xff]
    %v119 = vld [vmem:[#allocation2 + $0x80] sm:$0xff]
    %v120 = vld [vmem:[#allocation2 + $0x88] sm:$0xff]
    %v121 = vld [vmem:[#allocation2 + $0x90] sm:$0xff]
    %v122 = vld [vmem:[#allocation2 + $0x98] sm:$0xff]
    %v123 = vld [vmem:[#allocation2 + $0xa0] sm:$0xff]
    %v124 = vld [vmem:[#allocation2 + $0xa8] sm:$0xff]
    %v125 = vld [vmem:[#allocation2 + $0xb0] sm:$0xff]
    %v126 = vld [vmem:[#allocation2 + $0xb8] sm:$0xff]
    %v127 = vld [vmem:[#allocation2 + $0xc0] sm:$0xff]
    %v128 = vld [vmem:[#allocation2 + $0xc8] sm:$0xff]
    %v129 = vld [vmem:[#allocation2 + $0xd0] sm:$0xff]
    %v130 = vld [vmem:[#allocation2 + $0xd8] sm:$0xff]
    %v131 = vld [vmem:[#allocation2 + $0xe0] sm:$0xff]
    %v132 = vld [vmem:[#allocation2 + $0xe8] sm:$0xff]
    %v133 = vld [vmem:[#allocation2 + $0xf0] sm:$0xff]
    %v134 = vld [vmem:[#allocation2 + $0xf8] sm:$0xff]
    %v135 = vld [vmem:[%s4] sm:$0x1]
    %v137 = vperm.slane %v135, 0
    %139 = vmatpush.msra.mxu0 %v118
    %140 = vmatpush.msra.mxu0 %v117
    %141 = vmatpush.msra.mxu0 %v116
    %142 = vmatpush.msra.mxu0 %v115
    %143 = vmatpush.msra.mxu0 %v114
    %144 = vmatpush.msra.mxu0 %v113
    %145 = vmatpush.msra.mxu0 %v112
    %146 = vmatpush.msra.mxu0 %v111
    %147 = vmatpush.msra.mxu0 %v110
    %148 = vmatpush.msra.mxu0 %v109
    %149 = vmatpush.msra.mxu0 %v108
    %150 = vmatpush.msra.mxu0 %v107
    %151 = vmatpush.msra.mxu0 %v106
    %152 = vmatpush.msra.mxu0 %v105
    %153 = vmatpush.msra.mxu0 %v104
    %154 = vmatpush.msra.mxu0 %v103
    %155 = vmatmul.f32.gmra.mxu0 %v101
    %v156 = vpop.f32.mrf.mxu0
    %v157 = vadd.f32 %v137, %v156
    %158 = vdwg.mxu0
    %159 = vmatpush.msra.mxu0 %v134
    %160 = vmatpush.msra.mxu0 %v133
    %161 = vmatpush.msra.mxu0 %v132
    %162 = vmatpush.msra.mxu0 %v131
    %163 = vmatpush.msra.mxu0 %v130
    %164 = vmatpush.msra.mxu0 %v129
    %165 = vmatpush.msra.mxu0 %v128
    %166 = vmatpush.msra.mxu0 %v127
    %167 = vmatpush.msra.mxu0 %v126
    %168 = vmatpush.msra.mxu0 %v125
    %169 = vmatpush.msra.mxu0 %v124
    %170 = vmatpush.msra.mxu0 %v123
    %171 = vmatpush.msra.mxu0 %v122
    %172 = vmatpush.msra.mxu0 %v121
    %173 = vmatpush.msra.mxu0 %v120
    %174 = vmatpush.msra.mxu0 %v119
    %175 = vmatmul.f32.gmra.mxu0 %v102
    %v176 = vpop.f32.mrf.mxu0
    %v177 = vadd.f32 %v157, %v176
    %178 = vdwg.mxu0
    %v179 = vmax.f32 %v177, 0.0
    %v180 = vld [vmem:[%s5] sm:$0xff]
    %v181 = vld [vmem:[%s5 + $0x8] sm:$0xff]
    %v182 = vld [vmem:[%s5 + $0x10] sm:$0xff]
    %v183 = vld [vmem:[%s5 + $0x18] sm:$0xff]
    %v184 = vld [vmem:[%s5 + $0x20] sm:$0xff]
    %v185 = vld [vmem:[%s5 + $0x28] sm:$0xff]
    %v186 = vld [vmem:[%s5 + $0x30] sm:$0xff]
    %v187 = vld [vmem:[%s5 + $0x38] sm:$0xff]
    %v188 = vld [vmem:[%s5 + $0x40] sm:$0xff]
    %v189 = vld [vmem:[%s5 + $0x48] sm:$0xff]
    %v190 = vld [vmem:[%s5 + $0x50] sm:$0xff]
    %v191 = vld [vmem:[%s5 + $0x58] sm:$0xff]
    %v192 = vld [vmem:[%s5 + $0x60] sm:$0xff]
    %v193 = vld [vmem:[%s5 + $0x68] sm:$0xff]
    %v194 = vld [vmem:[%s5 + $0x70] sm:$0xff]
    %v195 = vld [vmem:[%s5 + $0x78] sm:$0xff]
    %v196 = vld [vmem:[%s6] sm:$0x1]
    %v198 = vperm.slane %v196, 0
    %200 = vmatpush.msra.mxu0 %v195
    %201 = vmatpush.msra.mxu0 %v194
    %202 = vmatpush.msra.mxu0 %v193
    %203 = vmatpush.msra.mxu0 %v192
    %204 = vmatpush.msra.mxu0 %v191
    %205 = vmatpush.msra.mxu0 %v190
    %206 = vmatpush.msra.mxu0 %v189
    %207 = vmatpush.msra.mxu0 %v188
    %208 = vmatpush.msra.mxu0 %v187
    %209 = vmatpush.msra.mxu0 %v186
    %210 = vmatpush.msra.mxu0 %v185
    %211 = vmatpush.msra.mxu0 %v184
    %212 = vmatpush.msra.mxu0 %v183
    %213 = vmatpush.msra.mxu0 %v182
    %214 = vmatpush.msra.mxu0 %v181
    %215 = vmatpush.msra.mxu0 %v180
    %216 = vmatmul.f32.gmra.mxu0 %v179
    %v217 = vpop.f32.mrf.mxu0
    %v218 = vadd.f32 %v198, %v217
    %219 = vdwg.mxu0
    %v220 = vmax.f32 %v218, 0.0
    %v221 = vld [vmem:[%s7] sm:$0xff]
    %v222 = vld [vmem:[%s7 + $0x8] sm:$0xff]
    %v223 = vld [vmem:[%s7 + $0x10] sm:$0xff]
    %v224 = vld [vmem:[%s7 + $0x18] sm:$0xff]
    %v225 = vld [vmem:[%s8] sm:$0x1]
    %v227 = vperm.slane %v225, 0
    %vm229 = vcmask 261120
    %v231 = vsel %vm229, %v220, 0
    %233 = vmatpush.msra.mxu0 0.0
    %234 = vmatpush.msra.mxu0 0.0
    %235 = vmatpush.msra.mxu0 0.0
    %236 = vmatpush.msra.mxu0 0.0
    %237 = vmatpush.msra.mxu0 0.0
    %238 = vmatpush.msra.mxu0 0.0
    %239 = vmatpush.msra.mxu0 0.0
    %240 = vmatpush.msra.mxu0 0.0
    %241 = vmatpush.msra.mxu0 0.0
    %242 = vmatpush.msra.mxu0 0.0
    %243 = vmatpush.msra.mxu0 0.0
    %244 = vmatpush.msra.mxu0 0.0
    %245 = vmatpush.msra.mxu0 %v224
    %246 = vmatpush.msra.mxu0 %v223
    %247 = vmatpush.msra.mxu0 %v222
    %248 = vmatpush.msra.mxu0 %v221
    %249 = vmatmul.f32.gmra.mxu0 %v231
    %v250 = vpop.f32.mrf.mxu0
    %v251 = vadd.f32 %v227, %v250
    %252 = vdwg.mxu0
    %vm253 = vcmask 31744
    %254 = vst.msk [vmem:[%s9] sm:$0xff] %vm253, %v251
    // Predicated region
    $region42: #{qnetwork_forward.1} parent=1 // pred_check
      _
    $region43: #{qnetwork_forward.1} parent=1 // pred_check_branch
      %256 = sbr.rel (0) target = $region45
    $region44: #{qnetwork_forward.1} parent=1 // pred_region
      _
    $region45: #{qnetwork_forward.1} parent=1 // pred_fallthru
      _
    // Predicated region
    $region46: #{qnetwork_forward.1} parent=1 // pred_check
      _
    $region47: #{qnetwork_forward.1} parent=1 // pred_check_branch
      %258 = sbr.rel (0) target = $region49
    $region48: #{qnetwork_forward.1} parent=1 // pred_region
      _
    $region49: #{qnetwork_forward.1} parent=1 // pred_fallthru
      _
    %259 = vsyncpa [#allocation3], 1

</llo_original>
